<compile_context>
chip_gen: v5e
topology: v5e:2x2
jax: 0.10.0
libtpu: 0.0.40
codegen_flags: <defaults>
</compile_context>

<pallas_src>
import functools

import jax
import jax.numpy as jnp
from jax.experimental import pallas as pl
from jax.experimental.pallas import tpu as pltpu


def multi_index_embedding_kernel(idx_ref, *refs, num_tables, inv_n):
    table_refs = refs[:num_tables]
    out_ref = refs[num_tables]

    idx = idx_ref[...]                       # (bm, n_axes) int32
    bm = out_ref.shape[0]

    acc = jnp.zeros(out_ref.shape, jnp.float32)
    for a, tab_ref in enumerate(table_refs):
        tab = tab_ref[...]                   # (num_emb_a, hidden) f32, VMEM resident
        num_emb = tab.shape[0]
        rows = jax.lax.broadcasted_iota(jnp.int32, (bm, num_emb), 1)
        one_hot = (rows == idx[:, a:a + 1]).astype(jnp.float32)   # (bm, num_emb)
        # Gather-as-matmul on the MXU: (bm, num_emb) @ (num_emb, hidden)
        acc = acc + jnp.dot(one_hot, tab, preferred_element_type=jnp.float32)
    # Mean over the per-axis lookups.
    out_ref[...] = (acc * inv_n).astype(out_ref.dtype)


def multi_index_embedding_forward(tables, index, *, bm=None):
    """tables: list of (num_emb_i, hidden) f32; index: (B, len(tables)) int32."""
    B, n_axes = index.shape
    assert n_axes == len(tables)
    hidden = tables[0].shape[1]

    if bm is None:
        if B < 8:
            bm = B                           # full-array block, always legal
        else:
            bm = max(8, (min(512, B) // 8) * 8)

    grid = pl.cdiv(B, bm)
    Bp = grid * bm
    # Pad ragged batch with index 0 (valid row), sliced off after the call.
    idx_p = index if Bp == B else jnp.pad(index, ((0, Bp - B), (0, 0)))

    kernel = functools.partial(
        multi_index_embedding_kernel,
        num_tables=len(tables), inv_n=1.0 / len(tables))

    flops = 2 * Bp * hidden * sum(int(t.shape[0]) for t in tables)
    bytes_accessed = (idx_p.size * 4
                      + sum(int(t.size) for t in tables) * 4
                      + Bp * hidden * 4)

    out = pl.pallas_call(
        kernel,
        out_shape=jax.ShapeDtypeStruct((Bp, hidden), jnp.float32),
        grid_spec=pltpu.PrefetchScalarGridSpec(
            num_scalar_prefetch=0,
            grid=(grid,),
            in_specs=[pl.BlockSpec((bm, n_axes), lambda i: (i, 0))]    # index tile
                    + [pl.BlockSpec(t.shape, lambda i: (0, 0))         # resident tables
                       for t in tables],
            out_specs=pl.BlockSpec((bm, hidden), lambda i: (i, 0)),
        ),
        compiler_params=pltpu.CompilerParams(
            dimension_semantics=("parallel",)),
        cost_estimate=pl.CostEstimate(
            flops=flops, transcendentals=0, bytes_accessed=bytes_accessed),
    )(idx_p, *tables)

    return out[:B] if Bp != B else out


def multi_index_embedding_reference(tables, index):
    out = jnp.zeros((index.shape[0], tables[0].shape[1]), jnp.float32)
    for i, tab in enumerate(tables):
        out = out + tab[index[:, i]]
    return out / len(tables)


if __name__ == "__main__":
    # Module config / shapes: MultiIndexEmbedding(hidden_dim=128, index_shape=(5, 7))
    HIDDEN = 128
    INDEX_SHAPE = (5, 7)
    B = 16

    key = jax.random.PRNGKey(0)
    k0, k1, ki = jax.random.split(key, 3)

    # torch.nn.Embedding weights (num_emb, hidden_dim), init_value=None case.
    tables = [
        jax.random.normal(k0, (INDEX_SHAPE[0], HIDDEN), jnp.float32),
        jax.random.normal(k1, (INDEX_SHAPE[1], HIDDEN), jnp.float32),
    ]

    # x: (B, n_axes) integer indices, one column per embedding axis.
    index = jnp.stack(
        [jax.random.randint(ki, (B,), 0, INDEX_SHAPE[0]),
         jax.random.randint(jax.random.fold_in(ki, 1), (B,), 0, INDEX_SHAPE[1])],
        axis=1).astype(jnp.int32)

    out = multi_index_embedding_forward(tables, index)
    out = jax.block_until_ready(out)

    ref = multi_index_embedding_reference(tables, index)
    assert out.shape == (B, HIDDEN)
    assert jnp.allclose(out, ref, atol=1e-5, rtol=1e-5), "mismatch vs reference"

    print("KERNEL_OK")
</pallas_src>

<mosaic_0001>
module attributes {stable_mosaic.version = 11 : i64} {
  func.func @multi_index_embedding_kernel(%arg0: i32, %arg1: memref<16x2xi32, #tpu.memory_space<vmem>>, %arg2: memref<5x128xf32, #tpu.memory_space<vmem>>, %arg3: memref<7x128xf32, #tpu.memory_space<vmem>>, %arg4: memref<16x128xf32, #tpu.memory_space<vmem>>) attributes {dimension_semantics = [#tpu.dimension_semantics<parallel>], iteration_bounds = array<i64: 1>, scalar_prefetch = 0 : i64, scratch_operands = 0 : i64, tpu.core_type = #tpu.core_type<tc>, window_params = [{transform_indices = @transform_0, window_bounds = array<i64: 16, 2>}, {pipeline_mode = #tpu.pipeline_mode<synchronous>, transform_indices = @transform_1, window_bounds = array<i64: 5, 128>}, {pipeline_mode = #tpu.pipeline_mode<synchronous>, transform_indices = @transform_2, window_bounds = array<i64: 7, 128>}, {transform_indices = @transform_3, window_bounds = array<i64: 16, 128>}]} {
    %c0 = arith.constant 0 : index
    %c0_0 = arith.constant 0 : index
    %0 = vector.load %arg1[%c0, %c0_0] : memref<16x2xi32, #tpu.memory_space<vmem>>, vector<16x2xi32>
    %cst = arith.constant 0.000000e+00 : f32
    %1 = vector.broadcast %cst : f32 to vector<16x128xf32>
    %c0_1 = arith.constant 0 : index
    %c0_2 = arith.constant 0 : index
    %2 = vector.load %arg2[%c0_1, %c0_2] : memref<5x128xf32, #tpu.memory_space<vmem>>, vector<5x128xf32>
    %3 = tpu.iota {dimensions = array<i32: 1>} : vector<16x5xi32>
    %4 = vector.extract_strided_slice %0 {offsets = [0, 0], sizes = [16, 1], strides = [1, 1]} : vector<16x2xi32> to vector<16x1xi32>
    %5 = vector.broadcast %4 : vector<16x1xi32> to vector<16x5xi32>
    %6 = arith.cmpi eq, %3, %5 : vector<16x5xi32>
    %7 = arith.extui %6 : vector<16x5xi1> to vector<16x5xi32>
    %8 = arith.sitofp %7 : vector<16x5xi32> to vector<16x5xf32>
    %cst_3 = arith.constant dense<0.000000e+00> : vector<16x128xf32>
    %9 = tpu.matmul %8, %2, %cst_3 {dimension_numbers = #tpu.dot_dimension_numbers<[1], [0], [0], [1], [0, 0, 1, 1], [], []>} : vector<16x5xf32>, vector<5x128xf32>, vector<16x128xf32> -> vector<16x128xf32>
    %10 = arith.addf %1, %9 : vector<16x128xf32>
    %c0_4 = arith.constant 0 : index
    %c0_5 = arith.constant 0 : index
    %11 = vector.load %arg3[%c0_4, %c0_5] : memref<7x128xf32, #tpu.memory_space<vmem>>, vector<7x128xf32>
    %12 = tpu.iota {dimensions = array<i32: 1>} : vector<16x7xi32>
    %13 = vector.extract_strided_slice %0 {offsets = [0, 1], sizes = [16, 1], strides = [1, 1]} : vector<16x2xi32> to vector<16x1xi32>
    %14 = vector.broadcast %13 : vector<16x1xi32> to vector<16x7xi32>
    %15 = arith.cmpi eq, %12, %14 : vector<16x7xi32>
    %16 = arith.extui %15 : vector<16x7xi1> to vector<16x7xi32>
    %17 = arith.sitofp %16 : vector<16x7xi32> to vector<16x7xf32>
    %cst_6 = arith.constant dense<0.000000e+00> : vector<16x128xf32>
    %18 = tpu.matmul %17, %11, %cst_6 {dimension_numbers = #tpu.dot_dimension_numbers<[1], [0], [0], [1], [0, 0, 1, 1], [], []>} : vector<16x7xf32>, vector<7x128xf32>, vector<16x128xf32> -> vector<16x128xf32>
    %19 = arith.addf %10, %18 : vector<16x128xf32>
    %cst_7 = arith.constant 5.000000e-01 : f32
    %20 = vector.broadcast %cst_7 : f32 to vector<16x128xf32>
    %21 = arith.mulf %19, %20 : vector<16x128xf32>
    %c0_8 = arith.constant 0 : index
    %c0_9 = arith.constant 0 : index
    %22 = vector.load %arg4[%c0_8, %c0_9] : memref<16x128xf32, #tpu.memory_space<vmem>>, vector<16x128xf32>
    tpu.vector_store %arg4[%c0_8, %c0_9], %21 {strides = array<i32>} : memref<16x128xf32, #tpu.memory_space<vmem>>, vector<16x128xf32>,
    return
  }
  func.func @transform_0(%arg0: i32) -> (i32, i32) {
    %c0_i32 = arith.constant 0 : i32
    %c0_i32_0 = arith.constant 0 : i32
    return %arg0, %c0_i32 : i32, i32
  }
  func.func @transform_1(%arg0: i32) -> (i32, i32) {
    %c0_i32 = arith.constant 0 : i32
    %c0_i32_0 = arith.constant 0 : i32
    %c0_i32_1 = arith.constant 0 : i32
    return %c0_i32, %c0_i32_0 : i32, i32
  }
  func.func @transform_2(%arg0: i32) -> (i32, i32) {
    %c0_i32 = arith.constant 0 : i32
    %c0_i32_0 = arith.constant 0 : i32
    %c0_i32_1 = arith.constant 0 : i32
    return %c0_i32, %c0_i32_0 : i32, i32
  }
  func.func @transform_3(%arg0: i32) -> (i32, i32) {
    %c0_i32 = arith.constant 0 : i32
    %c0_i32_0 = arith.constant 0 : i32
    return %arg0, %c0_i32 : i32, i32
  }
}

</mosaic_0001>

<llo_original>
// kernel: tpu_custom_call.1
$region0: #{tpu_custom_call.1}
  #allocation0 [shape = 'u32[]', space=smem, size = 0x4, offset = 0x4, fixed_abs, tag = 'smem constant byte address 0x4 - core index']
  #allocation1 [shape = 'u32[72,128]{1,0:T(1,128)}', space=vmem, size = 0x9000, scoped, tag = 'internal scratch']
  %s0 = inlined_call_operand.vmem [shape: s32[16,2], index: 0, kind: input, shape index: {}]
  %s1 = inlined_call_operand.vmem [shape: f32[5,128], index: 1, kind: input, shape index: {}]
  %s2 = inlined_call_operand.vmem [shape: f32[7,128], index: 2, kind: input, shape index: {}]
  %s3 = inlined_call_operand.hbm [shape: f32[16,128], index: 3, kind: output, shape index: {}]
  %s4 = sld [smem:[#allocation0]]
  $region22: #{tpu_custom_call.1} parent=0
    _
  %s6 = ssub.s32 1, %s4
  %s7 = scalar_select 0, %s6, %s4
  $region1: #{tpu_custom_call.1} parent=0
    #allocation2 [shape = 'u8[8192]{0}', space=vmem, size = 0x2000, scoped, tag = 'output window, operand 0, single buffered']
    #allocation3 [shape = 's32[1]{0}', space=sflag, size = 0x4, scoped, tag = 'scoped memory for tpu_custom_call.1']
    %8 = vsyncpa [#allocation3], 0
    // Predicated region
    $region2: #{tpu_custom_call.1} parent=1 // pred_check
      _
    $region3: #{tpu_custom_call.1} parent=1 // pred_check_branch
      %10 = sbr.rel (0) target = $region5
    $region4: #{tpu_custom_call.1} parent=1 // pred_region
      _
    $region5: #{tpu_custom_call.1} parent=1 // pred_fallthru
      _
    // Predicated region
    $region6: #{tpu_custom_call.1} parent=1 // pred_check
      _
    $region7: #{tpu_custom_call.1} parent=1 // pred_check_branch
      %12 = sbr.rel (0) target = $region9
    $region8: #{tpu_custom_call.1} parent=1 // pred_region
      _
    $region9: #{tpu_custom_call.1} parent=1 // pred_fallthru
      _
    // Predicated region
    $region10: #{tpu_custom_call.1} parent=1 // pred_check
      _
    $region11: #{tpu_custom_call.1} parent=1 // pred_check_branch
      %14 = sbr.rel (0) target = $region13
    $region12: #{tpu_custom_call.1} parent=1 // pred_region
      _
    $region13: #{tpu_custom_call.1} parent=1 // pred_fallthru
      _
    %v15 = vld [vmem:[%s0] sm:$0xff]
    %v16 = vld [vmem:[%s0 + $0x8] sm:$0xff]
    %v17 = vld [vmem:[%s1] sm:$0x1f]
    %v18 = vlaneseq
    %v19 = vand.u32 %v18, 127
    %20 = vset.pattern.permute.xlu0 0
    %21 = vperm.xlu0 %20, %v15
    %v22 = vpop.permute.xlu0 %21
    %23 = vset.pattern.permute.xlu0 0
    %24 = vperm.xlu0 %23, %v16
    %v25 = vpop.permute.xlu0 %24
    %vm26 = vcmp.eq.s32.totalorder %v19, %v22
    %vm27 = vcmp.eq.s32.totalorder %v19, %v25
    %v28 = vsel %vm26, 1, 0
    %v29 = vsel %vm27, 1, 0
    %v30 = vcvt.s32.f32 %v28
    %v31 = vcvt.s32.f32 %v29
    %v32 = vld [vmem:[%s2] sm:$0x7f]
    %33 = vset.pattern.permute.xlu0 1
    %34 = vperm.xlu0 %33, %v15
    %v35 = vpop.permute.xlu0 %34
    %36 = vset.pattern.permute.xlu0 1
    %37 = vperm.xlu0 %36, %v16
    %v38 = vpop.permute.xlu0 %37
    %vm39 = vcmp.eq.s32.totalorder %v19, %v35
    %vm40 = vcmp.eq.s32.totalorder %v19, %v38
    %v41 = vsel %vm39, 1, 0
    %v42 = vsel %vm40, 1, 0
    %v43 = vcvt.s32.f32 %v41
    %v44 = vcvt.s32.f32 %v42
    %vm45 = vcmask 56320
    %v47 = vsel %vm45, %v43, 0
    %v50 = vsel %vm45, %v44, 0
    %vm52 = vcmask 1046528
    %v54 = vsel %vm52, %v32, 0
    %56 = vmatpush.msra.mxu0 0.0
    %57 = vmatpush.msra.mxu0 0.0
    %58 = vmatpush.msra.mxu0 0.0
    %59 = vmatpush.msra.mxu0 0.0
    %60 = vmatpush.msra.mxu0 0.0
    %61 = vmatpush.msra.mxu0 0.0
    %62 = vmatpush.msra.mxu0 0.0
    %63 = vmatpush.msra.mxu0 0.0
    %64 = vmatpush.msra.mxu0 0.0
    %65 = vmatpush.msra.mxu0 0.0
    %66 = vmatpush.msra.mxu0 0.0
    %67 = vmatpush.msra.mxu0 0.0
    %68 = vmatpush.msra.mxu0 0.0
    %69 = vmatpush.msra.mxu0 0.0
    %70 = vmatpush.msra.mxu0 0.0
    %71 = vmatpush.msra.mxu0 %v54
    %72 = vmatmul.f32.gmra.mxu0 %v47
    %v73 = vpop.f32.mrf.mxu0
    %v74 = vadd.f32 0.0, %v73
    %75 = vmatmul.f32.gmra.mxu0 %v50
    %v76 = vpop.f32.mrf.mxu0
    %v77 = vadd.f32 0.0, %v76
    %78 = vdwg.mxu0
    %vm79 = vcmask 39936
    %v81 = vsel %vm79, %v30, 0
    %v84 = vsel %vm79, %v31, 0
    %vm86 = vcmask 1044480
    %v88 = vsel %vm86, %v17, 0
    %90 = vmatpush.msra.mxu0 0.0
    %91 = vmatpush.msra.mxu0 0.0
    %92 = vmatpush.msra.mxu0 0.0
    %93 = vmatpush.msra.mxu0 0.0
    %94 = vmatpush.msra.mxu0 0.0
    %95 = vmatpush.msra.mxu0 0.0
    %96 = vmatpush.msra.mxu0 0.0
    %97 = vmatpush.msra.mxu0 0.0
    %98 = vmatpush.msra.mxu0 0.0
    %99 = vmatpush.msra.mxu0 0.0
    %100 = vmatpush.msra.mxu0 0.0
    %101 = vmatpush.msra.mxu0 0.0
    %102 = vmatpush.msra.mxu0 0.0
    %103 = vmatpush.msra.mxu0 0.0
    %104 = vmatpush.msra.mxu0 0.0
    %105 = vmatpush.msra.mxu0 %v88
    %106 = vmatmul.f32.gmra.mxu0 %v81
    %v107 = vpop.f32.mrf.mxu0
    %v108 = vadd.f32 %v74, %v107
    %109 = vmatmul.f32.gmra.mxu0 %v84
    %v110 = vpop.f32.mrf.mxu0
    %v111 = vadd.f32 %v77, %v110
    %112 = vdwg.mxu0
    %v113 = vmul.f32 %v108, 0.5
    %v114 = vmul.f32 %v111, 0.5
    %115 = vst [vmem:[#allocation2] sm:$0xff] %v113
    %116 = vst [vmem:[#allocation2 + $0x8] sm:$0xff] %v114
    // Predicated region
    $region14: #{tpu_custom_call.1} parent=1 // pred_check
      _
    $region15: #{tpu_custom_call.1} parent=1 // pred_check_branch
      %118 = sbr.rel (0) target = $region17
    $region16: #{tpu_custom_call.1} parent=1 // pred_region
      %120 = vsyncadd [#allocation3], 0
      %s121 = sshll.u32 [#allocation2], 4
      %s122 = int_to_ptr.vmem [resolvable:$true] %s121
      %s123 = sshll.u32 %s3, 4
      %s124 = int_to_ptr.hbm [resolvable:$true] %s123
      %129 = dma.vmem_to_hbm [thread:$0]  %s122, 256, %s124, [#allocation3], 128, 128, 8
    $region17: #{tpu_custom_call.1} parent=1 // pred_fallthru
      _
    // Predicated region
    $region18: #{tpu_custom_call.1} parent=1 // pred_check
      _
    $region19: #{tpu_custom_call.1} parent=1 // pred_check_branch
      %131 = sbr.rel (0) target = $region21
    $region20: #{tpu_custom_call.1} parent=1 // pred_region
      %133 = dma.done [#allocation3], 256
    $region21: #{tpu_custom_call.1} parent=1 // pred_fallthru
      _
    %134 = vsyncpa [#allocation3], 1

</llo_original>
